<compile_context>
chip_gen: v7x
topology: tpu7x:2x2x1
jax: 0.10.0
libtpu: 0.0.40
codegen_flags: <defaults>
</compile_context>

<pallas_src>
import functools

import numpy as np
import jax
import jax.numpy as jnp
from jax.experimental import pallas as pl
from jax.experimental.pallas import tpu as pltpu

# ---------------- small config consistent with the module's __init__ -------------------
DIM = 128
N_HEADS = 4
N_KV_HEADS = 2
NUM_REP = N_HEADS // N_KV_HEADS
HEAD_DIM = DIM // N_HEADS // 2          # differential-attention half head = 16
KV_DIM = DIM // NUM_REP                 # 64 (k width == v width)
MULTIPLE_OF = 64
NORM_EPS = 1e-5
ROPE_THETA = 10000.0
BATCH = 2
SEQ = 16
LAYER_ID = 0

QKV_WIDTH = DIM + 2 * KV_DIM            # 256 lanes: [ q(128) | k(64) | v(64) ]


def _ffn_hidden(dim, hidden_dim, multiple_of, ffn_dim_multiplier=None):
    hidden_dim = int(2 * hidden_dim / 3)
    if ffn_dim_multiplier is not None:
        hidden_dim = int(ffn_dim_multiplier * hidden_dim)
    return multiple_of * ((hidden_dim + multiple_of - 1) // multiple_of)


FFN_HIDDEN = _ffn_hidden(DIM, 4 * DIM, MULTIPLE_OF)  # 384


# ------------------------------------ fused Pallas kernel ------------------------------
def _block_kernel(scal_ref, x_ref, cos_ref, sin_p1_ref, sin_m1_ref, amask_ref,
                  anorm_ref, wqkv_ref, wo_ref, subw_ref, fnorm_ref,
                  w13_ref, w2_ref, o_ref, *,
                  n_heads, n_kv_heads, head_dim, ffn_hidden, scale, eps):
    lam_full = scal_ref[0]
    lam_init = scal_ref[1]
    num_rep = n_heads // n_kv_heads
    dq = 2 * n_heads * head_dim           # 128
    dk = 2 * n_kv_heads * head_dim        # 64
    dv = 2 * head_dim                     # 32
    bf16 = jnp.bfloat16
    f32 = jnp.float32

    def rms(v, w):
        return v * jax.lax.rsqrt(jnp.mean(v * v, axis=-1, keepdims=True) + eps) * w

    x = x_ref[...]                                        # (R, D) f32, row = b*S + s
    xn = rms(x, anorm_ref[...])

    # Fused QKV projection: one (R,128)x(128,256) bf16 matmul, f32 accumulate.
    qkv = jnp.dot(xn.astype(bf16), wqkv_ref[...], preferred_element_type=f32)   # (R, 256)

    # Fused interleaved RoPE over the whole q|k|v slab (v lanes: cos=1, sin=0).
    #   rotated[2f]   = x[2f]  *cos_f - x[2f+1]*sin_f
    #   rotated[2f+1] = x[2f+1]*cos_f + x[2f]  *sin_f
    # Pair partners come from two static lane rolls; the wrapper pairs the sin tables
    # with the correct roll direction (probed once at prep time).  Wrap-around reads at
    # block boundaries always hit zero sin coefficients, so they are harmless.
    rot_back = qkv.shape[-1] - 1
    qkv = (qkv * cos_ref[...]
           + pltpu.roll(qkv, shift=1, axis=1) * sin_p1_ref[...]
           + pltpu.roll(qkv, shift=rot_back, axis=1) * sin_m1_ref[...])

    qkvb = qkv.astype(bf16)

    # Head-batched differential attention: stack pseudo-heads as a leading batch dim,
    # ordered [q1 heads 0..H-1, q2 heads 0..H-1].  GQA = re-slice kv lanes (no repeat).
    q_hs, k_hs, v_hs = [], [], []
    for comp in range(2):                                  # 0 -> q1/k1, 1 -> q2/k2
        for h in range(n_heads):
            g = h // num_rep
            q_hs.append(qkvb[:, (2 * h + comp) * head_dim:(2 * h + comp + 1) * head_dim])
            k_hs.append(qkvb[:, dq + (2 * g + comp) * head_dim:
                             dq + (2 * g + comp + 1) * head_dim])
            v_hs.append(qkvb[:, dq + dk + g * dv:dq + dk + (g + 1) * dv])
    qh = jnp.stack(q_hs)                                   # (2H, R, hd)  bf16
    kh = jnp.stack(k_hs)                                   # (2H, R, hd)  bf16
    vh = jnp.stack(v_hs)                                   # (2H, R, dv)  bf16

    # One batched score matmul + one batched softmax for all pseudo-heads.
    s = jax.lax.dot_general(qh, kh, (((2,), (2,)), ((0,), (0,))),
                            preferred_element_type=f32) * scale       # (2H, R, R)
    s = s + amask_ref[...]                                 # block-diagonal batch mask
    m = jnp.max(s, axis=-1, keepdims=True)
    e = jnp.exp(s - m)
    p = e * pl.reciprocal(jnp.sum(e, axis=-1, keepdims=True), approx=True)
    o = jax.lax.dot_general(p.astype(bf16), vh, (((2,), (1,)), ((0,), (0,))),
                            preferred_element_type=f32)               # (2H, R, dv)

    a = o[:n_heads] - lam_full * o[n_heads:]               # differential combine (H, R, dv)
    a = rms(a, subw_ref[...]) * (1.0 - lam_init)           # sub-RMSNorm + (1 - lambda_init)

    attn = jnp.concatenate([a[h] for h in range(n_heads)], axis=-1)    # lane-dense (R, D)
    h_res = x + jnp.dot(attn.astype(bf16), wo_ref[...], preferred_element_type=f32)

    # Feed-forward branch: fused norm + packed w1|w3 matmul + SwiGLU + w2 + residual.
    hn = rms(h_res, fnorm_ref[...])
    h13 = jnp.dot(hn.astype(bf16), w13_ref[...], preferred_element_type=f32)   # (R, 768)
    h1 = h13[:, :ffn_hidden]
    h3 = h13[:, ffn_hidden:]
    o_ref[...] = h_res + jnp.dot((h1 * jax.nn.sigmoid(h1) * h3).astype(bf16),
                                 w2_ref[...], preferred_element_type=f32)


# --------------------------- roll-direction probe (runs once, host side) ----------------
def _roll_shift1_is_jnp_like():
    """Probe pltpu.roll's rotation direction so the RoPE sin tables can be paired with
    the correct rolled operand regardless of the semantics convention."""
    def k(x_ref, o_ref):
        o_ref[...] = pltpu.roll(x_ref[...], shift=1, axis=1)
    x = jnp.tile(jnp.arange(128, dtype=jnp.float32)[None, :], (8, 1))
    y = pl.pallas_call(k, out_shape=jax.ShapeDtypeStruct((8, 128), jnp.float32))(x)
    # jnp.roll semantics: out[i] = x[i-1]  ->  y[0, 1] == x[0, 0] == 0.0
    return bool(y[0, 1] == 0.0)


# ------------------------------ one-time host-side packing ------------------------------
def prepare_block(params, batch, seq):
    """Transpose weights to (in,out), fuse QKV and W1|W3, cast matmul weights to bf16,
    compute the differential-attention lambdas, and build RoPE / batch-mask tables."""
    p = params
    bf16 = jnp.bfloat16

    lam_1 = jnp.exp(jnp.sum(p['lambda_q1'] * p['lambda_k1']))
    lam_2 = jnp.exp(jnp.sum(p['lambda_q2'] * p['lambda_k2']))
    lam_init = p['lambda_init'][0]
    scal = jnp.stack([lam_1 - lam_2 + lam_init, lam_init]).astype(jnp.float32)

    wqkv = jnp.concatenate([p['wq'].T, p['wk'].T, p['wv'].T], axis=1).astype(bf16)  # (128,256)
    w13 = jnp.concatenate([p['w1'].T, p['w3'].T], axis=1).astype(bf16)              # (128,768)
    woT = p['wo'].T.astype(bf16)                                                    # (128,128)
    w2T = p['w2'].T.astype(bf16)                                                    # (384,128)

    # RoPE tables laid out over the fused q|k|v lane axis (q: 8 pseudo-heads, k: 4,
    # v: passthrough).  Frequencies match precompute_freqs_cis(dim//n_heads) halved.
    rope_dim = DIM // N_HEADS
    half = HEAD_DIM // 2
    freqs = 1.0 / (ROPE_THETA ** (np.arange(0, rope_dim, 2, dtype=np.float32) / rope_dim))
    angles = np.outer(np.arange(seq, dtype=np.float32), freqs)[:, :half]    # (S, 8)
    cosv, sinv = np.cos(angles), np.sin(angles)
    cos_pair = np.repeat(cosv, 2, axis=1)                                    # c0,c0,c1,c1,...
    zeros = np.zeros_like(sinv)
    sin_even = np.stack([-sinv, zeros], axis=2).reshape(seq, 2 * half)       # -s0,0,-s1,0,...
    sin_odd = np.stack([zeros, sinv], axis=2).reshape(seq, 2 * half)         #  0,s0, 0,s1,...
    n_rot_ph = 2 * N_HEADS + 2 * N_KV_HEADS                                  # 12 rotated heads
    v_width = N_KV_HEADS * 2 * HEAD_DIM                                      # 64

    def full_table(rot_tile, v_fill):
        row = np.concatenate([np.tile(rot_tile, (1, n_rot_ph)),
                              np.full((seq, v_width), v_fill, np.float32)], axis=1)
        return jnp.asarray(np.tile(row, (batch, 1)), jnp.float32)            # (B*S, 256)

    cos_full = full_table(cos_pair.astype(np.float32), 1.0)
    sin_even_full = full_table(sin_even.astype(np.float32), 0.0)  # pairs with the x[i+1] roll
    sin_odd_full = full_table(sin_odd.astype(np.float32), 0.0)    # pairs with the x[i-1] roll

    if _roll_shift1_is_jnp_like():
        sin_p1, sin_m1 = sin_odd_full, sin_even_full   # roll(+1)[i]=x[i-1]; roll(w-1)[i]=x[i+1]
    else:
        sin_p1, sin_m1 = sin_even_full, sin_odd_full

    # Block-diagonal additive mask: batch is folded into the row dim, so cross-batch
    # score entries are pushed to -1e30 before the softmax.
    bid = np.repeat(np.arange(batch), seq)
    amask = jnp.asarray(np.where(bid[:, None] == bid[None, :], 0.0, -1e30), jnp.float32)

    return dict(
        scal=scal, cos=cos_full, sin_p1=sin_p1, sin_m1=sin_m1, amask=amask,
        attn_norm=p['attention_norm_w'].reshape(1, DIM),
        wqkv=wqkv, woT=woT,
        subw=p['subln_w'].reshape(1, 2 * HEAD_DIM),
        ffn_norm=p['ffn_norm_w'].reshape(1, DIM),
        w13=w13, w2T=w2T)


# --------------------------------------- wrapper ----------------------------------------
def transformer_block_forward(prep, x):
    B, S, D = x.shape
    R = B * S
    x2d = x.reshape(R, D)

    kernel = functools.partial(
        _block_kernel, n_heads=N_HEADS, n_kv_heads=N_KV_HEADS, head_dim=HEAD_DIM,
        ffn_hidden=FFN_HIDDEN, scale=HEAD_DIM ** -0.5, eps=NORM_EPS)

    full = lambda shape: pl.BlockSpec(shape, lambda i: (0, 0))

    out = pl.pallas_call(
        kernel,
        grid=(1,),   # batch folded into the sublane/row dim: a single grid step
        in_specs=[
            pl.BlockSpec(memory_space=pltpu.MemorySpace.SMEM),     # [lambda_full, lambda_init]
            full((R, D)),                                          # x rows (B*S, D)
            full((R, QKV_WIDTH)),                                  # RoPE cos table
            full((R, QKV_WIDTH)),                                  # RoPE sin (roll +1) table
            full((R, QKV_WIDTH)),                                  # RoPE sin (roll -1) table
            full((R, R)),                                          # block-diag batch mask
            full((1, D)),                                          # attention_norm_w
            full((D, QKV_WIDTH)),                                  # packed wq|wk|wv (bf16)
            full((D, D)),                                          # wo^T (bf16)
            full((1, 2 * HEAD_DIM)),                               # subln_w
            full((1, D)),                                          # ffn_norm_w
            full((D, 2 * FFN_HIDDEN)),                             # packed w1|w3 (bf16)
            full((FFN_HIDDEN, D)),                                 # w2^T (bf16)
        ],
        out_specs=full((R, D)),
        out_shape=jax.ShapeDtypeStruct((R, D), jnp.float32),
    )(prep['scal'], x2d, prep['cos'], prep['sin_p1'], prep['sin_m1'], prep['amask'],
      prep['attn_norm'], prep['wqkv'], prep['woT'], prep['subw'], prep['ffn_norm'],
      prep['w13'], prep['w2T'])
    return out.reshape(B, S, D)


# ------------------------------ pure-JAX reference (for checking) -----------------------
def _ref_rmsnorm(x, w, eps=NORM_EPS):
    return x * jax.lax.rsqrt(jnp.mean(x * x, axis=-1, keepdims=True) + eps) * w


def apply_rope(x, cos, sin):
    xr = x[..., 0::2]
    xi = x[..., 1::2]
    c = cos[None, :, None, :]
    s = sin[None, :, None, :]
    out_r = xr * c - xi * s
    out_i = xr * s + xi * c
    return jnp.stack([out_r, out_i], axis=-1).reshape(x.shape)


def split_heads(q, k, v, cos, sin):
    B, S, _ = q.shape
    q = q.reshape(B, S, 2 * N_HEADS, HEAD_DIM)
    k = k.reshape(B, S, 2 * N_KV_HEADS, HEAD_DIM)
    v = v.reshape(B, S, N_KV_HEADS, 2 * HEAD_DIM)
    q = apply_rope(q, cos, sin)
    k = apply_rope(k, cos, sin)
    q = q.reshape(B, S, N_HEADS, 2, HEAD_DIM)
    k = k.reshape(B, S, N_KV_HEADS, 2, HEAD_DIM)
    q1 = jnp.transpose(q[:, :, :, 0], (0, 2, 1, 3))
    q2 = jnp.transpose(q[:, :, :, 1], (0, 2, 1, 3))
    k1 = jnp.repeat(jnp.transpose(k[:, :, :, 0], (0, 2, 1, 3)), NUM_REP, axis=1)
    k2 = jnp.repeat(jnp.transpose(k[:, :, :, 1], (0, 2, 1, 3)), NUM_REP, axis=1)
    vt = jnp.repeat(jnp.transpose(v, (0, 2, 1, 3)), NUM_REP, axis=1)
    return q1, q2, k1, k2, vt


def ref_forward(params, x, cos, sin):
    p = params
    B, S, D = x.shape
    xn = _ref_rmsnorm(x, p['attention_norm_w'])
    q = xn @ p['wq'].T
    k = xn @ p['wk'].T
    v = xn @ p['wv'].T
    q1, q2, k1, k2, vt = split_heads(q, k, v, cos, sin)
    scale = HEAD_DIM ** -0.5

    def attn(qh, kh, vh):
        s = jnp.einsum('bhqd,bhkd->bhqk', qh, kh) * scale
        return jnp.einsum('bhqk,bhkd->bhqd', jax.nn.softmax(s, axis=-1), vh)

    a1 = attn(q1, k1, vt)
    a2 = attn(q2, k2, vt)
    lam_full = (jnp.exp(jnp.sum(p['lambda_q1'] * p['lambda_k1']))
                - jnp.exp(jnp.sum(p['lambda_q2'] * p['lambda_k2']))
                + p['lambda_init'][0])
    a = a1 - lam_full * a2
    a = _ref_rmsnorm(a, p['subln_w']) * (1.0 - p['lambda_init'][0])
    a = jnp.transpose(a, (0, 2, 1, 3)).reshape(B, S, D)
    h = x + a @ p['wo'].T
    hn = _ref_rmsnorm(h, p['ffn_norm_w'])
    h1 = hn @ p['w1'].T
    ff = (h1 * jax.nn.sigmoid(h1) * (hn @ p['w3'].T)) @ p['w2'].T
    return h + ff


# ------------------------------------- params -------------------------------------------
def init_params(key):
    ks = jax.random.split(key, 11)
    init_std = 0.02 / (2 * (LAYER_ID + 1)) ** 0.5
    return dict(
        wq=jax.random.normal(ks[0], (DIM, DIM), jnp.float32) * 0.02,
        wk=jax.random.normal(ks[1], (KV_DIM, DIM), jnp.float32) * 0.02,
        wv=jax.random.normal(ks[2], (KV_DIM, DIM), jnp.float32) * 0.02,
        wo=jax.random.normal(ks[3], (DIM, DIM), jnp.float32) * init_std,
        lambda_q1=jax.random.normal(ks[4], (HEAD_DIM,), jnp.float32) * 0.1,
        lambda_k1=jax.random.normal(ks[5], (HEAD_DIM,), jnp.float32) * 0.1,
        lambda_q2=jax.random.normal(ks[6], (HEAD_DIM,), jnp.float32) * 0.1,
        lambda_k2=jax.random.normal(ks[7], (HEAD_DIM,), jnp.float32) * 0.1,
        lambda_init=jnp.array([0.8], jnp.float32),
        subln_w=jnp.ones((2 * HEAD_DIM,), jnp.float32),
        attention_norm_w=jnp.ones((DIM,), jnp.float32),
        ffn_norm_w=jnp.ones((DIM,), jnp.float32),
        w1=jax.random.normal(ks[8], (FFN_HIDDEN, DIM), jnp.float32) * 0.02,
        w2=jax.random.normal(ks[9], (DIM, FFN_HIDDEN), jnp.float32) * init_std,
        w3=jax.random.normal(ks[10], (FFN_HIDDEN, DIM), jnp.float32) * init_std,
    )


if __name__ == "__main__":
    key = jax.random.PRNGKey(0)
    kx, kp = jax.random.split(key)
    params = init_params(kp)
    x = jax.random.normal(kx, (BATCH, SEQ, DIM), jnp.float32)

    prep = prepare_block(params, BATCH, SEQ)   # one-time host-side packing / constant prep

    fwd = jax.jit(transformer_block_forward)
    out = jax.block_until_ready(fwd(prep, x))

    # freqs_cis equivalent (precompute_freqs_cis(dim // n_heads), then halved in forward)
    rope_dim = DIM // N_HEADS
    freqs = 1.0 / (ROPE_THETA ** (jnp.arange(0, rope_dim, 2, dtype=jnp.float32) / rope_dim))
    angles = jnp.outer(jnp.arange(SEQ, dtype=jnp.float32), freqs)[:, : HEAD_DIM // 2]
    ref = ref_forward(params, x, jnp.cos(angles), jnp.sin(angles))

    assert out.shape == (BATCH, SEQ, DIM)
    assert bool(jnp.all(jnp.isfinite(out)))
    max_err = float(jnp.max(jnp.abs(out - ref)))
    assert max_err < 1e-2, f"max abs err {max_err}"
    print("KERNEL_OK")
</pallas_src>

<mosaic_0001>
module attributes {stable_mosaic.version = 11 : i64} {
  func.func @k(%arg0: memref<8x128xf32, #tpu.memory_space<vmem>>, %arg1: memref<8x128xf32, #tpu.memory_space<vmem>>) attributes {dimension_semantics = [], scalar_prefetch = 0 : i64, scratch_operands = 0 : i64, tpu.core_type = #tpu.core_type<tc>} {
    %c0 = arith.constant 0 : index
    %c0_0 = arith.constant 0 : index
    %0 = vector.load %arg0[%c0, %c0_0] : memref<8x128xf32, #tpu.memory_space<vmem>>, vector<8x128xf32>
    %c1_i32 = arith.constant 1 : i32
    %1 = tpu.dynamic_rotate %0 by %c1_i32 dim 1 : vector<8x128xf32>, i32 -> vector<8x128xf32>
    %c0_1 = arith.constant 0 : index
    %c0_2 = arith.constant 0 : index
    %2 = vector.load %arg1[%c0_1, %c0_2] : memref<8x128xf32, #tpu.memory_space<vmem>>, vector<8x128xf32>
    tpu.vector_store %arg1[%c0_1, %c0_2], %1 {strides = array<i32>} : memref<8x128xf32, #tpu.memory_space<vmem>>, vector<8x128xf32>,
    return
  }
}

</mosaic_0001>

<llo_original>
// kernel: tpu_custom_call.1
$region0: #{tpu_custom_call.1}
  #allocation0 [shape = 'u32[]', space=smem, size = 0x4, offset = 0x4, fixed_abs, tag = 'smem constant byte address 0x4 - core index']
  #allocation1 [shape = 'u32[144,128]{1,0:T(1,128)}', space=vmem, size = 0x12000, scoped, tag = 'internal scratch']
  %s0 = inlined_call_operand.hbm [shape: f32[8,128], index: 0, kind: input, shape index: {}]
  %s1 = inlined_call_operand.hbm [shape: f32[8,128], index: 1, kind: output, shape index: {}]
  %s2 = sld [smem:[#allocation0]]
  $region18: #{tpu_custom_call.1} parent=0
    _
  %s4 = ssub.s32 1, %s2
  %s5 = scalar_select 0, %s4, %s2
  $region1: #{tpu_custom_call.1} parent=0
    #allocation2 [shape = 'u8[4096]{0}', space=vmem, size = 0x1000, scoped, tag = 'input window, operand 0, single buffered']
    #allocation3 [shape = 's32[1]{0}', space=sflag, size = 0x4, scoped, tag = 'scoped memory for tpu_custom_call.1']
    #allocation4 [shape = 's32[1]{0}', space=sflag, size = 0x4, scoped, tag = 'scoped memory for tpu_custom_call.1']
    #allocation5 [shape = 'u8[4096]{0}', space=vmem, size = 0x1000, scoped, tag = 'output window, operand 0, single buffered']
    %6 = vsyncpa [#allocation3], 0
    %7 = vsyncpa [#allocation4], 0
    // Predicated region
    $region2: #{tpu_custom_call.1} parent=1 // pred_check
      _
    $region3: #{tpu_custom_call.1} parent=1 // pred_check_branch
      %9 = sbr.rel (0) target = $region5
    $region4: #{tpu_custom_call.1} parent=1 // pred_region
      %s11 = ssub.s32 128, 128
      %12 = vsyncadd [#allocation3], %s11
      %s14 = sshll.u32 [#allocation2], 4
      %s15 = int_to_ptr.vmem [resolvable:$true] %s14
      %17 = dma.hbm_to_vmem [thread:$0]  %s0, 128, %s15, [#allocation3]
    $region5: #{tpu_custom_call.1} parent=1 // pred_fallthru
      _
    // Predicated region
    $region6: #{tpu_custom_call.1} parent=1 // pred_check
      _
    $region7: #{tpu_custom_call.1} parent=1 // pred_check_branch
      %19 = sbr.rel (0) target = $region9
    $region8: #{tpu_custom_call.1} parent=1 // pred_region
      %20 = dma.done [#allocation3], 128
    $region9: #{tpu_custom_call.1} parent=1 // pred_fallthru
      _
    %v21 = vld [vmem:[#allocation2] sm:$0xff]
    %22 = vrot.lane.b32.xlu0 %v21, 1
    %v23 = vpop.permute.xlu0 %22
    %24 = vst [vmem:[#allocation5] sm:$0xff] %v23
    // Predicated region
    $region10: #{tpu_custom_call.1} parent=1 // pred_check
      _
    $region11: #{tpu_custom_call.1} parent=1 // pred_check_branch
      %26 = sbr.rel (0) target = $region13
    $region12: #{tpu_custom_call.1} parent=1 // pred_region
      %s28 = ssub.s32 128, 128
      %29 = vsyncadd [#allocation4], %s28
      %s31 = sshll.u32 [#allocation5], 4
      %s32 = int_to_ptr.vmem [resolvable:$true] %s31
      %34 = dma.vmem_to_hbm [thread:$0]  %s32, 128, %s1, [#allocation4]
    $region13: #{tpu_custom_call.1} parent=1 // pred_fallthru
      _
    // Predicated region
    $region14: #{tpu_custom_call.1} parent=1 // pred_check
      _
    $region15: #{tpu_custom_call.1} parent=1 // pred_check_branch
      %36 = sbr.rel (0) target = $region17
    $region16: #{tpu_custom_call.1} parent=1 // pred_region
      %37 = dma.done [#allocation4], 128
    $region17: #{tpu_custom_call.1} parent=1 // pred_fallthru
      _
    %38 = vsyncpa [#allocation3], 1
    %39 = vsyncpa [#allocation4], 1

</llo_original>
